<compile_context>
chip_gen: v5e
topology: v5e:2x2
jax: 0.10.0
libtpu: 0.0.40
codegen_flags: <defaults>
</compile_context>

<pallas_src>
import functools

import jax
import jax.numpy as jnp
from jax import lax
from jax.experimental import pallas as pl
from jax.experimental.pallas import tpu as pltpu

LN_EPS = 1e-5  # torch.nn.LayerNorm default


def _cdiv(a, b):
    return (a + b - 1) // b


def _round_up(a, b):
    return _cdiv(a, b) * b


# ---------------------------------------------------------------------------
# Pallas kernel: fused (im2col-matmul conv) + bias + channel LayerNorm + ReLU
# ---------------------------------------------------------------------------
def _conv_ln_relu_kernel(a_ref, w_ref, s_ref, p_ref, o_ref, *, cout):
    # a_ref: (TG, grp*K)        bf16; grp im2col rows packed per group row
    # w_ref: (grp*K, grp*Cout)  bf16; block-diagonal conv weight  kron(I_grp, W)
    # s_ref: (grp*Cout, grp*Cout) f32 0/1 group-sum matrix (per-group reduce + broadcast)
    # p_ref: (3, grp*Cout)      f32 rows: [bias, ln_gamma, ln_beta], channel-tiled grp times
    # o_ref: (TG, grp*Cout)     f32 lane-dense output (128 lanes when Cout divides 128)
    inv_c = 1.0 / float(cout)

    # bf16 x bf16 -> f32 accumulation on the MXU.
    y = jnp.dot(a_ref[...], w_ref[...], preferred_element_type=jnp.float32)
    p = p_ref[...]
    y = y + p[0:1, :]                                    # conv bias

    # LayerNorm over the true channel dim (groups of `cout` lanes).  Both stats matmuls
    # depend only on y, so they issue back-to-back on the otherwise-idle MXU.
    s = s_ref[...]
    sum_y = jnp.dot(y, s, preferred_element_type=jnp.float32)
    sum_yy = jnp.dot(y * y, s, preferred_element_type=jnp.float32)
    mean = sum_y * inv_c
    var = jnp.maximum(sum_yy * inv_c - mean * mean, 0.0)   # clamp: cancellation safety
    y_hat = (y - mean) * lax.rsqrt(var + LN_EPS)
    y_hat = y_hat * p[1:2, :] + p[2:3, :]

    # ReLU
    o_ref[...] = jnp.maximum(y_hat, 0.0).astype(o_ref.dtype)
    # TODO(synk): nn.Dropout(p=0.2) in training mode is stochastic (would need
    # pltpu.prng_seed / prng_random_bits); treated as identity here (eval-mode semantics).


def _fused_conv_block(a, w2d, bias, gamma, beta, *, tg_default=1024):
    """a: (M, K) im2col patches (any float dtype), w2d: (K, Cout). Returns (M, Cout) f32."""
    M, K = a.shape
    Cout = w2d.shape[1]

    # Pack `grp` spatial positions per 128-lane output row (lane-dense stores).
    grp = (128 // Cout) if (Cout <= 128 and 128 % Cout == 0) else 1

    M_pad = _round_up(M, grp)
    if M_pad != M:
        # Tail pad (< grp rows); fuses into the patch-producer chain, and the matching
        # out[:M] slice below fuses into the consumer's NCHW transpose.
        a = jnp.pad(a, ((0, M_pad - M), (0, 0)))

    G = M_pad // grp              # group rows
    Kb = grp * K                  # packed contraction dim
    Cb = grp * Cout               # packed output lanes (128 when grp = 128 // Cout)

    # bf16 data stream (f32 accumulation inside the kernel).
    abig = a.astype(jnp.bfloat16).reshape(G, Kb)                       # free reshape
    wbig = jnp.kron(jnp.eye(grp, dtype=jnp.bfloat16),
                    w2d.astype(jnp.bfloat16))                          # (Kb, Cb) block-diag
    smat = jnp.kron(jnp.eye(grp, dtype=jnp.float32),
                    jnp.ones((Cout, Cout), jnp.float32))               # (Cb, Cb)
    params = jnp.stack([jnp.tile(bias, grp),
                        jnp.tile(gamma, grp),
                        jnp.tile(beta, grp)], axis=0).astype(jnp.float32)  # (3, Cb)

    # --- tile-size selection ------------------------------------------------------------
    # Per group-row VMEM: bf16 A tile (x2 buffers) + f32 out tile (x2 buffers) + ~4 f32 temps.
    bytes_per_row = Kb * 2 * 2 + Cb * 4 * 2 + Cb * 4 * 4
    vmem_budget = 20 * 1024 * 1024      # safe under every generation's scoped VMEM limit
    tg = min(tg_default, max(8, (vmem_budget // bytes_per_row) // 8 * 8))
    if G > 8:
        # Keep >= 2 grid steps so v7x can shard the "parallel" axis across its 2 TensorCores.
        tg = min(tg, _round_up(_cdiv(G, 2), 8))
    tg = max(8, min(tg, _round_up(G, 8)))
    grid = (_cdiv(G, tg),)

    out = pl.pallas_call(
        functools.partial(_conv_ln_relu_kernel, cout=Cout),
        out_shape=jax.ShapeDtypeStruct((G, Cb), jnp.float32),
        grid_spec=pltpu.PrefetchScalarGridSpec(
            num_scalar_prefetch=0,
            grid=grid,
            in_specs=[
                pl.BlockSpec((tg, Kb), lambda i: (i, 0)),   # bf16 packed patches tile
                pl.BlockSpec((Kb, Cb), lambda i: (0, 0)),   # bf16 block-diag weight (resident)
                pl.BlockSpec((Cb, Cb), lambda i: (0, 0)),   # f32 group-sum matrix (resident)
                pl.BlockSpec((3, Cb), lambda i: (0, 0)),    # f32 bias/gamma/beta (resident)
            ],
            out_specs=pl.BlockSpec((tg, Cb), lambda i: (i, 0)),
        ),
        compiler_params=pltpu.CompilerParams(
            dimension_semantics=("parallel",),
            vmem_limit_bytes=32 * 1024 * 1024,
            # Let XLA fuse the patch extraction into the input DMA so the kh*kw-inflated
            # A matrix need not be materialized in HBM (bf16 halves it even if it is).
            allow_input_fusion=[True, False, False, False],
        ),
    )(abig, wbig, smat, params)

    out = out.reshape(M_pad, Cout)
    return out[:M] if M_pad != M else out


# ---------------------------------------------------------------------------
# Plain-JAX glue: im2col extraction + layout plumbing (NCHW in / NCHW out)
# ---------------------------------------------------------------------------
def _im2col(x, kh, kw, stride, padding):
    """x: (N, Cin, H, W) -> (N*Ho*Wo, Cin*kh*kw), plus Ho, Wo."""
    N, Cin, H, W = x.shape
    xp = jnp.pad(x, ((0, 0), (0, 0), (padding, padding), (padding, padding)))
    Ho = (H + 2 * padding - kh) // stride + 1
    Wo = (W + 2 * padding - kw) // stride + 1
    patches = []
    for i in range(kh):
        for j in range(kw):
            patches.append(
                xp[:, :, i:i + stride * Ho:stride, j:j + stride * Wo:stride])
    # (N, Cin, kh*kw, Ho, Wo) -> (N, Ho, Wo, Cin, kh*kw) -> (M, K)
    p = jnp.stack(patches, axis=2)
    p = p.transpose(0, 3, 4, 1, 2)
    return p.reshape(N * Ho * Wo, Cin * kh * kw), Ho, Wo


@functools.partial(jax.jit, static_argnames=("kernel_size", "stride", "padding"))
def conv2d_block_forward(x, conv_w, conv_b, ln_gamma, ln_beta,
                         *, kernel_size, stride, padding):
    """Equivalent of Conv2dBlock.forward (eval mode).

    x:        (N, Cin, H, W)            NCHW, like PyTorch
    conv_w:   (Cout, Cin, kh, kw)       PyTorch conv weight layout
    conv_b:   (Cout,)
    ln_gamma: (Cout,)
    ln_beta:  (Cout,)
    returns:  (N, Cout, Ho, Wo)         float32
    """
    del kernel_size  # implied by conv_w shape; kept for signature parity
    N, Cin, H, W = x.shape
    Cout, _, kh, kw = conv_w.shape

    # bf16 input stream: halves the (kh*kw-inflated) patch matrix in HBM / VMEM.
    a, Ho, Wo = _im2col(x.astype(jnp.bfloat16), kh, kw, stride, padding)  # (M, K) bf16
    w2d = conv_w.reshape(Cout, Cin * kh * kw).T                           # (K, Cout)

    y = _fused_conv_block(a, w2d, conv_b, ln_gamma, ln_beta)              # (M, Cout) f32
    # NCHW f32 output kept for semantic parity with the PyTorch module.  If the consumer
    # accepts NHWC / bf16, drop this transpose (and cast) to save a full HBM pass.
    y = y.reshape(N, Ho, Wo, Cout).transpose(0, 3, 1, 2)
    return y


# ---------------------------------------------------------------------------
# Reference (pure JAX/XLA) for correctness sanity check
# ---------------------------------------------------------------------------
def _reference(x, conv_w, conv_b, ln_gamma, ln_beta, *, stride, padding):
    y = lax.conv_general_dilated(
        x, conv_w, window_strides=(stride, stride),
        padding=[(padding, padding), (padding, padding)],
        dimension_numbers=("NCHW", "OIHW", "NCHW"))
    y = y + conv_b.reshape(1, -1, 1, 1)
    # LayerNorm over channel dim
    yt = y.transpose(0, 2, 3, 1)
    mean = jnp.mean(yt, axis=-1, keepdims=True)
    var = jnp.mean((yt - mean) ** 2, axis=-1, keepdims=True)
    yt = (yt - mean) / jnp.sqrt(var + LN_EPS)
    yt = yt * ln_gamma + ln_beta
    y = yt.transpose(0, 3, 1, 2)
    return jnp.maximum(y, 0.0)


if __name__ == "__main__":
    # Small shapes consistent with the module: N=2, Cin=4, H=W=16,
    # Cout=8, kernel=3, stride=1, padding=1.
    N, Cin, H, W = 2, 4, 16, 16
    Cout, kh, kw = 8, 3, 3
    stride, padding = 1, 1

    key = jax.random.PRNGKey(0)
    k_x, k_w, k_b = jax.random.split(key, 3)

    x = jax.random.normal(k_x, (N, Cin, H, W), dtype=jnp.float32)

    # Deterministic parameter init (PyTorch-style uniform(-1/sqrt(fan_in), ...))
    fan_in = Cin * kh * kw
    bound = 1.0 / (fan_in ** 0.5)
    conv_w = jax.random.uniform(k_w, (Cout, Cin, kh, kw), jnp.float32,
                                minval=-bound, maxval=bound)
    conv_b = jax.random.uniform(k_b, (Cout,), jnp.float32,
                                minval=-bound, maxval=bound)
    ln_gamma = jnp.ones((Cout,), jnp.float32)   # nn.LayerNorm default
    ln_beta = jnp.zeros((Cout,), jnp.float32)

    out = conv2d_block_forward(x, conv_w, conv_b, ln_gamma, ln_beta,
                               kernel_size=kh, stride=stride, padding=padding)
    out = jax.block_until_ready(out)
    assert out.shape == (N, Cout, H, W), out.shape

    # Reference computed on the same bf16-rounded inputs the kernel streams (accumulation
    # and LayerNorm math stay in f32), so the remaining difference is accumulation order.
    xq = x.astype(jnp.bfloat16).astype(jnp.float32)
    wq = conv_w.astype(jnp.bfloat16).astype(jnp.float32)
    ref = _reference(xq, wq, conv_b, ln_gamma, ln_beta,
                     stride=stride, padding=padding)
    assert jnp.allclose(out, ref, atol=2e-2, rtol=2e-2), \
        float(jnp.max(jnp.abs(out - ref)))

    print("KERNEL_OK")
</pallas_src>

<mosaic_0001>
module attributes {stable_mosaic.version = 11 : i64} {
  func.func @_conv_ln_relu_kernel(%arg0: i32, %arg1: memref<16x576xbf16, #tpu.memory_space<vmem>>, %arg2: memref<576x128xbf16, #tpu.memory_space<vmem>>, %arg3: memref<128x128xf32, #tpu.memory_space<vmem>>, %arg4: memref<3x128xf32, #tpu.memory_space<vmem>>, %arg5: memref<16x128xf32, #tpu.memory_space<vmem>>) attributes {dimension_semantics = [#tpu.dimension_semantics<parallel>], iteration_bounds = array<i64: 2>, scalar_prefetch = 0 : i64, scratch_operands = 0 : i64, tpu.core_type = #tpu.core_type<tc>, window_params = [{transform_indices = @transform_0, window_bounds = array<i64: 16, 576>}, {pipeline_mode = #tpu.pipeline_mode<synchronous>, transform_indices = @transform_1, window_bounds = array<i64: 576, 128>}, {pipeline_mode = #tpu.pipeline_mode<synchronous>, transform_indices = @transform_2, window_bounds = array<i64: 128, 128>}, {pipeline_mode = #tpu.pipeline_mode<synchronous>, transform_indices = @transform_3, window_bounds = array<i64: 3, 128>}, {transform_indices = @transform_4, window_bounds = array<i64: 16, 128>}]} {
    %c0 = arith.constant 0 : index
    %c0_0 = arith.constant 0 : index
    %0 = vector.load %arg1[%c0, %c0_0] : memref<16x576xbf16, #tpu.memory_space<vmem>>, vector<16x576xbf16>
    %c0_1 = arith.constant 0 : index
    %c0_2 = arith.constant 0 : index
    %1 = vector.load %arg2[%c0_1, %c0_2] : memref<576x128xbf16, #tpu.memory_space<vmem>>, vector<576x128xbf16>
    %cst = arith.constant dense<0.000000e+00> : vector<16x128xf32>
    %2 = tpu.matmul %0, %1, %cst {dimension_numbers = #tpu.dot_dimension_numbers<[1], [0], [0], [1], [0, 0, 1, 1], [], []>} : vector<16x576xbf16>, vector<576x128xbf16>, vector<16x128xf32> -> vector<16x128xf32>
    %c0_3 = arith.constant 0 : index
    %c0_4 = arith.constant 0 : index
    %3 = vector.load %arg4[%c0_3, %c0_4] : memref<3x128xf32, #tpu.memory_space<vmem>>, vector<3x128xf32>
    %4 = vector.extract_strided_slice %3 {offsets = [0, 0], sizes = [1, 128], strides = [1, 1]} : vector<3x128xf32> to vector<1x128xf32>
    %5 = vector.broadcast %4 : vector<1x128xf32> to vector<16x128xf32>
    %6 = arith.addf %2, %5 : vector<16x128xf32>
    %c0_5 = arith.constant 0 : index
    %c0_6 = arith.constant 0 : index
    %7 = vector.load %arg3[%c0_5, %c0_6] : memref<128x128xf32, #tpu.memory_space<vmem>>, vector<128x128xf32>
    %cst_7 = arith.constant dense<0.000000e+00> : vector<16x128xf32>
    %8 = tpu.matmul %6, %7, %cst_7 {dimension_numbers = #tpu.dot_dimension_numbers<[1], [0], [0], [1], [0, 0, 1, 1], [], []>} : vector<16x128xf32>, vector<128x128xf32>, vector<16x128xf32> -> vector<16x128xf32>
    %9 = arith.mulf %6, %6 : vector<16x128xf32>
    %cst_8 = arith.constant dense<0.000000e+00> : vector<16x128xf32>
    %10 = tpu.matmul %9, %7, %cst_8 {dimension_numbers = #tpu.dot_dimension_numbers<[1], [0], [0], [1], [0, 0, 1, 1], [], []>} : vector<16x128xf32>, vector<128x128xf32>, vector<16x128xf32> -> vector<16x128xf32>
    %cst_9 = arith.constant 1.250000e-01 : f32
    %11 = vector.broadcast %cst_9 : f32 to vector<16x128xf32>
    %12 = arith.mulf %8, %11 : vector<16x128xf32>
    %cst_10 = arith.constant 1.250000e-01 : f32
    %13 = vector.broadcast %cst_10 : f32 to vector<16x128xf32>
    %14 = arith.mulf %10, %13 : vector<16x128xf32>
    %15 = arith.mulf %12, %12 : vector<16x128xf32>
    %16 = arith.subf %14, %15 : vector<16x128xf32>
    %cst_11 = arith.constant 0.000000e+00 : f32
    %17 = vector.broadcast %cst_11 : f32 to vector<16x128xf32>
    %18 = arith.maximumf %16, %17 : vector<16x128xf32>
    %19 = arith.subf %6, %12 : vector<16x128xf32>
    %cst_12 = arith.constant 9.99999974E-6 : f32
    %20 = vector.broadcast %cst_12 : f32 to vector<16x128xf32>
    %21 = arith.addf %18, %20 : vector<16x128xf32>
    %22 = math.rsqrt %21 : vector<16x128xf32>
    %23 = arith.mulf %19, %22 : vector<16x128xf32>
    %24 = vector.extract_strided_slice %3 {offsets = [1, 0], sizes = [1, 128], strides = [1, 1]} : vector<3x128xf32> to vector<1x128xf32>
    %25 = vector.broadcast %24 : vector<1x128xf32> to vector<16x128xf32>
    %26 = arith.mulf %23, %25 : vector<16x128xf32>
    %27 = vector.extract_strided_slice %3 {offsets = [2, 0], sizes = [1, 128], strides = [1, 1]} : vector<3x128xf32> to vector<1x128xf32>
    %28 = vector.broadcast %27 : vector<1x128xf32> to vector<16x128xf32>
    %29 = arith.addf %26, %28 : vector<16x128xf32>
    %cst_13 = arith.constant 0.000000e+00 : f32
    %30 = vector.broadcast %cst_13 : f32 to vector<16x128xf32>
    %31 = arith.maximumf %29, %30 : vector<16x128xf32>
    %c0_14 = arith.constant 0 : index
    %c0_15 = arith.constant 0 : index
    %32 = vector.load %arg5[%c0_14, %c0_15] : memref<16x128xf32, #tpu.memory_space<vmem>>, vector<16x128xf32>
    tpu.vector_store %arg5[%c0_14, %c0_15], %31 {strides = array<i32>} : memref<16x128xf32, #tpu.memory_space<vmem>>, vector<16x128xf32>,
    return
  }
  func.func @transform_0(%arg0: i32) -> (i32, i32) {
    %c0_i32 = arith.constant 0 : i32
    %c0_i32_0 = arith.constant 0 : i32
    return %arg0, %c0_i32 : i32, i32
  }
  func.func @transform_1(%arg0: i32) -> (i32, i32) {
    %c0_i32 = arith.constant 0 : i32
    %c0_i32_0 = arith.constant 0 : i32
    %c0_i32_1 = arith.constant 0 : i32
    return %c0_i32, %c0_i32_0 : i32, i32
  }
  func.func @transform_2(%arg0: i32) -> (i32, i32) {
    %c0_i32 = arith.constant 0 : i32
    %c0_i32_0 = arith.constant 0 : i32
    %c0_i32_1 = arith.constant 0 : i32
    return %c0_i32, %c0_i32_0 : i32, i32
  }
  func.func @transform_3(%arg0: i32) -> (i32, i32) {
    %c0_i32 = arith.constant 0 : i32
    %c0_i32_0 = arith.constant 0 : i32
    %c0_i32_1 = arith.constant 0 : i32
    return %c0_i32, %c0_i32_0 : i32, i32
  }
  func.func @transform_4(%arg0: i32) -> (i32, i32) {
    %c0_i32 = arith.constant 0 : i32
    %c0_i32_0 = arith.constant 0 : i32
    return %arg0, %c0_i32 : i32, i32
  }
}

</mosaic_0001>

<llo_original>
// kernel: tile.18
$region0: #{tile.18}
  #allocation0 [shape = 's32[1]{0}', space=sflag, size = 0x4, scoped, tag = 'scoped memory for tile.18']
  %s0 = inlined_call_operand.vmem [shape: f32[8], index: 0, kind: input, shape index: {}]
  %s1 = inlined_call_operand.vmem [shape: f32[16,8], index: 1, kind: output, shape index: {}]
  // Predicated region
  $region2: #{tile.18} parent=0 // pred_check
    _
  $region3: #{tile.18} parent=0 // pred_check_branch
    %3 = sbr.rel (0) target = $region5
  $region4: #{tile.18} parent=0 // pred_region
    _
  $region5: #{tile.18} parent=0 // pred_fallthru
    _
  %v4 = vld [vmem:[%s0] ss:$0 sm:$0xff]
  %5 = vst [vmem:[%s1] sm:$0xff] %v4
  %s6 = scalar_lea.vmem %s1, 8
  %7 = vst [vmem:[%s6] sm:$0xff] %v4

// kernel: tile.27
$region0: #{tile.27}
  %s0 = inlined_call_operand.vmem [shape: f32[16,8], index: 0, kind: input, shape index: {}]
  %s1 = inlined_call_operand.vmem [shape: f32[1,128], index: 1, kind: output, shape index: {}]
  $region1: #{tile.27} parent=0
    #allocation0 [shape = 'u8[4096]{0}', space=vmem, size = 0x1000, scoped, tag = 'scoped mem for output reshape']
    %v2 = vld [vmem:[%s0] sm:$0x1]
    %vm3 = vcmask 64512
    %4 = vst.msk [vmem:[#allocation0] sm:$0x1] %vm3, %v2
    %s5 = scalar_lea.vmem %s0, 15
    %v6 = vld [vmem:[%s5] sm:$0x1]
    %7 = vrot.lane.b32.xlu0 %v6, 120
    %v8 = vpop.permute.xlu0 %7
    %vm9 = vcmask 1048512
    %10 = vst.msk [vmem:[#allocation0] sm:$0x1] %vm9, %v8
    %s11 = scalar_lea.vmem %s0, 14
    %v12 = vld [vmem:[%s11] sm:$0x1]
    %13 = vrot.lane.b32.xlu0 %v12, 112
    %v14 = vpop.permute.xlu0 %13
    %vm15 = vcmask 982912
    %16 = vst.msk [vmem:[#allocation0] sm:$0x1] %vm15, %v14
    %s17 = scalar_lea.vmem %s0, 13
    %v18 = vld [vmem:[%s17] sm:$0x1]
    %19 = vrot.lane.b32.xlu0 %v18, 104
    %v20 = vpop.permute.xlu0 %19
    %vm21 = vcmask 917312
    %22 = vst.msk [vmem:[#allocation0] sm:$0x1] %vm21, %v20
    %s23 = scalar_lea.vmem %s0, 12
    %v24 = vld [vmem:[%s23] sm:$0x1]
    %25 = vrot.lane.b32.xlu0 %v24, 96
    %v26 = vpop.permute.xlu0 %25
    %vm27 = vcmask 851712
    %28 = vst.msk [vmem:[#allocation0] sm:$0x1] %vm27, %v26
    %s29 = scalar_lea.vmem %s0, 11
    %v30 = vld [vmem:[%s29] sm:$0x1]
    %31 = vrot.lane.b32.xlu0 %v30, 88
    %v32 = vpop.permute.xlu0 %31
    %vm33 = vcmask 786112
    %34 = vst.msk [vmem:[#allocation0] sm:$0x1] %vm33, %v32
    %s35 = scalar_lea.vmem %s0, 10
    %v36 = vld [vmem:[%s35] sm:$0x1]
    %37 = vrot.lane.b32.xlu0 %v36, 80
    %v38 = vpop.permute.xlu0 %37
    %vm39 = vcmask 720512
    %40 = vst.msk [vmem:[#allocation0] sm:$0x1] %vm39, %v38
    %s41 = scalar_lea.vmem %s0, 9
    %v42 = vld [vmem:[%s41] sm:$0x1]
    %43 = vrot.lane.b32.xlu0 %v42, 72
    %v44 = vpop.permute.xlu0 %43
    %vm45 = vcmask 654912
    %46 = vst.msk [vmem:[#allocation0] sm:$0x1] %vm45, %v44
    %s47 = scalar_lea.vmem %s0, 8
    %v48 = vld [vmem:[%s47] sm:$0x1]
    %49 = vrot.lane.b32.xlu0 %v48, 64
    %v50 = vpop.permute.xlu0 %49
    %vm51 = vcmask 589312
    %52 = vst.msk [vmem:[#allocation0] sm:$0x1] %vm51, %v50
    %s53 = scalar_lea.vmem %s0, 7
    %v54 = vld [vmem:[%s53] sm:$0x1]
    %55 = vrot.lane.b32.xlu0 %v54, 56
    %v56 = vpop.permute.xlu0 %55
    %vm57 = vcmask 523712
    %58 = vst.msk [vmem:[#allocation0] sm:$0x1] %vm57, %v56
    %s59 = scalar_lea.vmem %s0, 6
    %v60 = vld [vmem:[%s59] sm:$0x1]
    %61 = vrot.lane.b32.xlu0 %v60, 48
    %v62 = vpop.permute.xlu0 %61
    %vm63 = vcmask 458112
    %64 = vst.msk [vmem:[#allocation0] sm:$0x1] %vm63, %v62
    %s65 = scalar_lea.vmem %s0, 5
    %v66 = vld [vmem:[%s65] sm:$0x1]
    %67 = vrot.lane.b32.xlu0 %v66, 40
    %v68 = vpop.permute.xlu0 %67
    %vm69 = vcmask 392512
    %70 = vst.msk [vmem:[#allocation0] sm:$0x1] %vm69, %v68
    %s71 = scalar_lea.vmem %s0, 4
    %v72 = vld [vmem:[%s71] sm:$0x1]
    %73 = vrot.lane.b32.xlu0 %v72, 32
    %v74 = vpop.permute.xlu0 %73
    %vm75 = vcmask 326912
    %76 = vst.msk [vmem:[#allocation0] sm:$0x1] %vm75, %v74
    %s77 = scalar_lea.vmem %s0, 3
    %v78 = vld [vmem:[%s77] sm:$0x1]
    %79 = vrot.lane.b32.xlu0 %v78, 24
    %v80 = vpop.permute.xlu0 %79
    %vm81 = vcmask 261312
    %82 = vst.msk [vmem:[#allocation0] sm:$0x1] %vm81, %v80
    %s83 = scalar_lea.vmem %s0, 2
    %v84 = vld [vmem:[%s83] sm:$0x1]
    %85 = vrot.lane.b32.xlu0 %v84, 16
    %v86 = vpop.permute.xlu0 %85
    %vm87 = vcmask 195712
    %88 = vst.msk [vmem:[#allocation0] sm:$0x1] %vm87, %v86
    %s89 = scalar_lea.vmem %s0, 1
    %v90 = vld [vmem:[%s89] sm:$0x1]
    %91 = vrot.lane.b32.xlu0 %v90, 8
    %v92 = vpop.permute.xlu0 %91
    %vm93 = vcmask 130112
    %94 = vst.msk [vmem:[#allocation0] sm:$0x1] %vm93, %v92
    %s96 = ssub.s32 2, 1
    %v97 = vld [vmem:[#allocation0] sm:%s96]
    %s99 = ssub.s32 2, 1
    %100 = vst [vmem:[%s1] sm:%s99] %v97

// kernel: conv2d_block_forward.1
$region0: #{conv2d_block_forward.1}
  #allocation0 [shape = 'u32[]', space=smem, size = 0x4, offset = 0x4, fixed_abs, tag = 'smem constant byte address 0x4 - core index']
  #allocation1 [shape = 'u32[72,128]{1,0:T(1,128)}', space=vmem, size = 0x9000, scoped, tag = 'internal scratch']
  %s0 = inlined_call_operand.vmem [shape: bf16[32,576], index: 0, kind: input, shape index: {}]
  %s1 = inlined_call_operand.vmem [shape: bf16[576,128], index: 1, kind: input, shape index: {}]
  %s2 = inlined_call_operand.vmem [shape: f32[128,128], index: 2, kind: input, shape index: {}]
  %s3 = inlined_call_operand.vmem [shape: f32[3,128], index: 3, kind: input, shape index: {}]
  %s4 = inlined_call_operand.vmem [shape: f32[32,128], index: 4, kind: output, shape index: {}]
  %s5 = sld [smem:[#allocation0]]
  $region49: #{conv2d_block_forward.1} parent=0
    _
  %s7 = ssub.s32 1, %s5
  %s8 = scalar_select 0, %s7, %s5
  loop: start=0, step=1, limit=4
  $region2: #{conv2d_block_forward.1} parent=0 // loop_pre_header
    _
  $region3: #{conv2d_block_forward.1} parent=0 // loop_header
    %s10 = sphi 0, %s14
    %p11 = scmp.ge.s32.totalorder %s10, 4
    %s20 = sphi 0, %s22
    %s23 = sphi 0, %s20
    %s24 = sphi 0, %s23
    %s40 = sphi 0, %s24
    %s44 = sphi 0, %s44
    %s46 = sphi 0, %s44
    %s47 = sphi 0, %s46
    %s61 = sphi 0, %s47
    %s65 = sphi 0, %s65
    %s67 = sphi 0, %s65
    %s68 = sphi 0, %s67
    %s82 = sphi 0, %s68
    %s86 = sphi 0, %s86
    %s88 = sphi 0, %s86
    %s89 = sphi 0, %s88
    %s103 = sphi 0, %s89
    %s109 = sphi 0, %s111
    %s112 = sphi 0, %s109
    %s113 = sphi 0, %s112
    %s129 = sphi 0, %s113
  $region4: #{conv2d_block_forward.1} parent=0 // loop_header_branch
    %13 = sbr.rel (%p11) target = $region8
  $region5: #{conv2d_block_forward.1} parent=0 // loop_body
    %s15 = ssub.s32 %s10, 1
    %s16 = ssub.s32 %s10, 2
    %s17 = sadd.s32 %s10, 1
    %s18 = ssub.s32 %s10, %s17
    %p19 = scmp.eq.s32.totalorder %s18, 0
    %s21 = sadd.s32 %s20, 1
    %s22 = scalar_select %p19, %s20, %s21
    %p25 = pneg %p19
    %p26 = scmp.eq.s32.totalorder %s10, 1
    %p27 = por %p25, %p26
    %p28 = scmp.ne.s32.totalorder %s20, %s23
    %p29 = scmp.eq.s32.totalorder %s10, 0
    %p30 = por %p28, %p29
    %p31 = scmp.ne.s32.totalorder %s20, %s23
    %p32 = scmp.eq.s32.totalorder %s15, 1
    %p33 = por %p31, %p32
    %p34 = scmp.ne.s32.totalorder %s23, %s24
    %p35 = scmp.eq.s32.totalorder %s15, 0
    %p36 = por %p34, %p35
    %p37 = scmp.ne.s32.totalorder %s23, %s24
    %p38 = scmp.eq.s32.totalorder %s16, 1
    %p39 = por %p37, %p38
    %p41 = scmp.ne.s32.totalorder %s24, %s40
    %p42 = scmp.eq.s32.totalorder %s16, 0
    %p43 = por %p41, %p42
    %s45 = sadd.s32 %s44, 1
    %p48 = scmp.eq.s32.totalorder %s10, 1
    %p49 = scmp.ne.s32.totalorder %s44, %s46
    %p50 = scmp.eq.s32.totalorder %s10, 0
    %p51 = por %p49, %p50
    %p52 = scmp.ne.s32.totalorder %s44, %s46
    %p53 = scmp.eq.s32.totalorder %s15, 1
    %p54 = por %p52, %p53
    %p55 = scmp.ne.s32.totalorder %s46, %s47
    %p56 = scmp.eq.s32.totalorder %s15, 0
    %p57 = por %p55, %p56
    %p58 = scmp.ne.s32.totalorder %s46, %s47
    %p59 = scmp.eq.s32.totalorder %s16, 1
    %p60 = por %p58, %p59
    %p62 = scmp.ne.s32.totalorder %s47, %s61
    %p63 = scmp.eq.s32.totalorder %s16, 0
    %p64 = por %p62, %p63
    %s66 = sadd.s32 %s65, 1
    %p69 = scmp.eq.s32.totalorder %s10, 1
    %p70 = scmp.ne.s32.totalorder %s65, %s67
    %p71 = scmp.eq.s32.totalorder %s10, 0
    %p72 = por %p70, %p71
    %p73 = scmp.ne.s32.totalorder %s65, %s67
    %p74 = scmp.eq.s32.totalorder %s15, 1
    %p75 = por %p73, %p74
    %p76 = scmp.ne.s32.totalorder %s67, %s68
    %p77 = scmp.eq.s32.totalorder %s15, 0
    %p78 = por %p76, %p77
    %p79 = scmp.ne.s32.totalorder %s67, %s68
    %p80 = scmp.eq.s32.totalorder %s16, 1
    %p81 = por %p79, %p80
    %p83 = scmp.ne.s32.totalorder %s68, %s82
    %p84 = scmp.eq.s32.totalorder %s16, 0
    %p85 = por %p83, %p84
    %s87 = sadd.s32 %s86, 1
    %p90 = scmp.eq.s32.totalorder %s10, 1
    %p91 = scmp.ne.s32.totalorder %s86, %s88
    %p92 = scmp.eq.s32.totalorder %s10, 0
    %p93 = por %p91, %p92
    %p94 = scmp.ne.s32.totalorder %s86, %s88
    %p95 = scmp.eq.s32.totalorder %s15, 1
    %p96 = por %p94, %p95
    %p97 = scmp.ne.s32.totalorder %s88, %s89
    %p98 = scmp.eq.s32.totalorder %s15, 0
    %p99 = por %p97, %p98
    %p100 = scmp.ne.s32.totalorder %s88, %s89
    %p101 = scmp.eq.s32.totalorder %s16, 1
    %p102 = por %p100, %p101
    %p104 = scmp.ne.s32.totalorder %s89, %s103
    %p105 = scmp.eq.s32.totalorder %s16, 0
    %p106 = por %p104, %p105
    %s107 = ssub.s32 %s10, %s17
    %p108 = scmp.eq.s32.totalorder %s107, 0
    %s110 = sadd.s32 %s109, 1
    %s111 = scalar_select %p108, %s109, %s110
    %p114 = pneg %p108
    %p115 = scmp.eq.s32.totalorder %s10, 1
    %p116 = por %p114, %p115
    %p117 = scmp.ne.s32.totalorder %s109, %s112
    %p118 = scmp.eq.s32.totalorder %s10, 0
    %p119 = por %p117, %p118
    %p120 = scmp.ne.s32.totalorder %s109, %s112
    %p121 = scmp.eq.s32.totalorder %s15, 1
    %p122 = por %p120, %p121
    %p123 = scmp.ne.s32.totalorder %s112, %s113
    %p124 = scmp.eq.s32.totalorder %s15, 0
    %p125 = por %p123, %p124
    %p126 = scmp.ne.s32.totalorder %s112, %s113
    %p127 = scmp.eq.s32.totalorder %s16, 1
    %p128 = por %p126, %p127
    %p130 = scmp.ne.s32.totalorder %s113, %s129
    %p131 = scmp.eq.s32.totalorder %s16, 0
    %p132 = por %p130, %p131
    %p133 = scmp.le.s32.totalorder 1, %s10
    %p134 = scmp.lt.s32.totalorder %s10, 3
    %p135 = pnand %p133, %p134
    %p136 = pneg %p135
    // Predicated region
    $region9: #{conv2d_block_forward.1} parent=5 // pred_check
      _
    $region10: #{conv2d_block_forward.1} parent=5 // pred_check_branch
      %138 = sbr.rel (%p135) target = $region12
    $region11: #{conv2d_block_forward.1} parent=5 // pred_region
      %s139 = ssub.s32 %s10, 1
      // Predicated region
      $region13: #{conv2d_block_forward.1} parent=11 // pred_check
        %p140 = pneg %p57
      $region14: #{conv2d_block_forward.1} parent=11 // pred_check_branch
        %142 = sbr.rel (%p140) target = $region16
      $region15: #{conv2d_block_forward.1} parent=11 // pred_region
        _
      $region16: #{conv2d_block_forward.1} parent=11 // pred_fallthru
        _
      // Predicated region
      $region17: #{conv2d_block_forward.1} parent=11 // pred_check
        %p143 = pneg %p78
      $region18: #{conv2d_block_forward.1} parent=11 // pred_check_branch
        %145 = sbr.rel (%p143) target = $region20
      $region19: #{conv2d_block_forward.1} parent=11 // pred_region
        _
      $region20: #{conv2d_block_forward.1} parent=11 // pred_fallthru
        _
      // Predicated region
      $region21: #{conv2d_block_forward.1} parent=11 // pred_check
        %p146 = pneg %p99
      $region22: #{conv2d_block_forward.1} parent=11 // pred_check_branch
        %148 = sbr.rel (%p146) target = $region24
      $region23: #{conv2d_block_forward.1} parent=11 // pred_region
        _
      $region24: #{conv2d_block_forward.1} parent=11 // pred_fallthru
        _
    $region12: #{conv2d_block_forward.1} parent=5 // pred_fallthru
      _
    %p149 = scmp.lt.s32.totalorder %s10, 2
    // Predicated region
    $region25: #{conv2d_block_forward.1} parent=5 // pred_check
      %p150 = pneg %p149
    $region26: #{conv2d_block_forward.1} parent=5 // pred_check_branch
      %152 = sbr.rel (%p150) target = $region28
    $region27: #{conv2d_block_forward.1} parent=5 // pred_region
      // Predicated region
      $region29: #{conv2d_block_forward.1} parent=27 // pred_check
        %p153 = pneg %p30
      $region30: #{conv2d_block_forward.1} parent=27 // pred_check_branch
        %155 = sbr.rel (%p153) target = $region32
      $region31: #{conv2d_block_forward.1} parent=27 // pred_region
        %s156 = smul.u32 2, %s10
        %p157 = scmp.lt.s32.totalorder %s156, 3
        %s158 = scalar_select %p157, %s156, 3
        %s159 = smul.addr %s158, 5
        %s160 = smul.addr %s159, 4
        %s161 = scalar_lea.vmem %s0, %s160
        %s162 = smul.u32 2, %s10
      $region32: #{conv2d_block_forward.1} parent=27 // pred_fallthru
        _
    $region28: #{conv2d_block_forward.1} parent=5 // pred_fallthru
      _
    %p163 = scmp.le.s32.totalorder 1, %s10
    %p164 = scmp.lt.s32.totalorder %s10, 3
    %p165 = pnand %p163, %p164
    %p166 = pneg %p165
    // Predicated region
    $region33: #{conv2d_block_forward.1} parent=5 // pred_check
      _
    $region34: #{conv2d_block_forward.1} parent=5 // pred_check_branch
      %168 = sbr.rel (%p165) target = $region36
    $region35: #{conv2d_block_forward.1} parent=5 // pred_region
      %s169 = ssub.s32 %s10, 1
      %s170 = smul.u32 2, %s15
      %p171 = scmp.lt.s32.totalorder %s170, 3
      %s172 = scalar_select %p171, %s170, 3
      %s173 = smul.addr %s172, 5
      %s174 = smul.addr %s173, 4
      %s175 = scalar_lea.vmem %s0, %s174
      %p176 = pneg %p36
      %p177 = pneg %p33
      %p178 = pneg %p57
      %p179 = pneg %p54
      %p180 = pneg %p78
      %p181 = pneg %p75
      %p182 = pneg %p99
      %p183 = pneg %p96
      %p184 = pneg %p125
      %p185 = pneg %p122
      %s186 = smul.u32 2, %s15
      %p187 = scmp.lt.s32.totalorder %s186, 3
      %s188 = scalar_select %p187, %s186, 3
      %s189 = smul.addr %s188, 8
      %s190 = scalar_lea.vmem %s4, %s189
      %s191 = smul.u32 2, %s15
      %p192 = scmp.lt.s32.totalorder %s191, 3
      %s193 = scalar_select %p192, %s191, 3
      %s194 = smul.addr %s193, 5
      %s195 = smul.addr %s194, 4
      %s196 = scalar_lea.vmem %s0, %s195
      %s197 = smul.u32 2, %s15
      %s198 = smul.u32 2, %s15
      %p199 = scmp.lt.s32.totalorder %s198, 3
      %s200 = scalar_select %p199, %s198, 3
      %s201 = smul.addr %s200, 8
      %s202 = scalar_lea.vmem %s4, %s201
      %s203 = smul.u32 2, %s15
      %v205 = vld [vmem:[%s196] sm:$0xff]
      %v206 = vld [vmem:[%s196 + $0x8] sm:$0xff]
      %v207 = vld [vmem:[%s196 + $0x10] sm:$0xf]
      %v208 = vld [vmem:[%s196 + $0x14] sm:$0xff]
      %v209 = vld [vmem:[%s196 + $0x1c] sm:$0xff]
      %v210 = vld [vmem:[%s196 + $0x24] sm:$0xf]
      %v211 = vld [vmem:[%s1] sm:$0xf]
      %v212 = vld [vmem:[%s1 + $0x4] sm:$0xf]
      %v213 = vld [vmem:[%s1 + $0x8] sm:$0xf]
      %v214 = vld [vmem:[%s1 + $0xc] sm:$0xf]
      %v215 = vld [vmem:[%s1 + $0x10] sm:$0xf]
      %v216 = vld [vmem:[%s1 + $0x14] sm:$0xf]
      %v217 = vld [vmem:[%s1 + $0x18] sm:$0xf]
      %v218 = vld [vmem:[%s1 + $0x1c] sm:$0xf]
      %v219 = vld [vmem:[%s1 + $0x20] sm:$0xf]
      %v220 = vld [vmem:[%s1 + $0x24] sm:$0xf]
      %v221 = vld [vmem:[%s1 + $0x28] sm:$0xf]
      %v222 = vld [vmem:[%s1 + $0x2c] sm:$0xf]
      %v223 = vld [vmem:[%s1 + $0x30] sm:$0xf]
      %v224 = vld [vmem:[%s1 + $0x34] sm:$0xf]
      %v225 = vld [vmem:[%s1 + $0x38] sm:$0xf]
      %v226 = vld [vmem:[%s1 + $0x3c] sm:$0xf]
      %v227 = vld [vmem:[%s1 + $0x40] sm:$0xf]
      %v228 = vld [vmem:[%s1 + $0x44] sm:$0xf]
      %v229 = vld [vmem:[%s1 + $0x48] sm:$0xf]
      %v230 = vld [vmem:[%s1 + $0x4c] sm:$0xf]
      %v231 = vld [vmem:[%s1 + $0x50] sm:$0xf]
      %v232 = vld [vmem:[%s1 + $0x54] sm:$0xf]
      %v233 = vld [vmem:[%s1 + $0x58] sm:$0xf]
      %v234 = vld [vmem:[%s1 + $0x5c] sm:$0xf]
      %v235 = vld [vmem:[%s1 + $0x60] sm:$0xf]
      %v236 = vld [vmem:[%s1 + $0x64] sm:$0xf]
      %v237 = vld [vmem:[%s1 + $0x68] sm:$0xf]
      %v238 = vld [vmem:[%s1 + $0x6c] sm:$0xf]
      %v239 = vld [vmem:[%s1 + $0x70] sm:$0xf]
      %v240 = vld [vmem:[%s1 + $0x74] sm:$0xf]
      %v241 = vld [vmem:[%s1 + $0x78] sm:$0xf]
      %v242 = vld [vmem:[%s1 + $0x7c] sm:$0xf]
      %v243 = vld [vmem:[%s1 + $0x80] sm:$0xf]
      %v244 = vld [vmem:[%s1 + $0x84] sm:$0xf]
      %v245 = vld [vmem:[%s1 + $0x88] sm:$0xf]
      %v246 = vld [vmem:[%s1 + $0x8c] sm:$0xf]
      %v247 = vld [vmem:[%s1 + $0x90] sm:$0xf]
      %v248 = vld [vmem:[%s1 + $0x94] sm:$0xf]
      %v249 = vld [vmem:[%s1 + $0x98] sm:$0xf]
      %v250 = vld [vmem:[%s1 + $0x9c] sm:$0xf]
      %v251 = vld [vmem:[%s1 + $0xa0] sm:$0xf]
      %v252 = vld [vmem:[%s1 + $0xa4] sm:$0xf]
      %v253 = vld [vmem:[%s1 + $0xa8] sm:$0xf]
      %v254 = vld [vmem:[%s1 + $0xac] sm:$0xf]
      %v255 = vld [vmem:[%s1 + $0xb0] sm:$0xf]
      %v256 = vld [vmem:[%s1 + $0xb4] sm:$0xf]
      %v257 = vld [vmem:[%s1 + $0xb8] sm:$0xf]
      %v258 = vld [vmem:[%s1 + $0xbc] sm:$0xf]
      %v259 = vld [vmem:[%s1 + $0xc0] sm:$0xf]
      %v260 = vld [vmem:[%s1 + $0xc4] sm:$0xf]
      %v261 = vld [vmem:[%s1 + $0xc8] sm:$0xf]
      %v262 = vld [vmem:[%s1 + $0xcc] sm:$0xf]
      %v263 = vld [vmem:[%s1 + $0xd0] sm:$0xf]
      %v264 = vld [vmem:[%s1 + $0xd4] sm:$0xf]
      %v265 = vld [vmem:[%s1 + $0xd8] sm:$0xf]
      %v266 = vld [vmem:[%s1 + $0xdc] sm:$0xf]
      %v267 = vld [vmem:[%s1 + $0xe0] sm:$0xf]
      %v268 = vld [vmem:[%s1 + $0xe4] sm:$0xf]
      %v269 = vld [vmem:[%s1 + $0xe8] sm:$0xf]
      %v270 = vld [vmem:[%s1 + $0xec] sm:$0xf]
      %v271 = vld [vmem:[%s1 + $0xf0] sm:$0xf]
      %v272 = vld [vmem:[%s1 + $0xf4] sm:$0xf]
      %v273 = vld [vmem:[%s1 + $0xf8] sm:$0xf]
      %v274 = vld [vmem:[%s1 + $0xfc] sm:$0xf]
      %v275 = vld [vmem:[%s1 + $0x100] sm:$0xf]
      %v276 = vld [vmem:[%s1 + $0x104] sm:$0xf]
      %v277 = vld [vmem:[%s1 + $0x108] sm:$0xf]
      %v278 = vld [vmem:[%s1 + $0x10c] sm:$0xf]
      %v279 = vld [vmem:[%s1 + $0x110] sm:$0xf]
      %v280 = vld [vmem:[%s1 + $0x114] sm:$0xf]
      %v281 = vld [vmem:[%s1 + $0x118] sm:$0xf]
      %v282 = vld [vmem:[%s1 + $0x11c] sm:$0xf]
      %v283 = vld [vmem:[%s3] sm:$0x7]
      %v284 = vperm.slane %v283, 0
      %v291 = vunpack.c.l.b16 %v205
      %v292 = vunpack.c.h.b16 %v205
      %v293 = vunpack.c.l.b16 %v206
      %v294 = vunpack.c.h.b16 %v206
      %v295 = vunpack.c.l.b16 %v207
      %v296 = vunpack.c.l.b16 %v208
      %v297 = vunpack.c.h.b16 %v208
      %v298 = vunpack.c.l.b16 %v209
      %v299 = vunpack.c.h.b16 %v209
      %v300 = vunpack.c.l.b16 %v210
      %v301 = vpack.c.b16 %v296, %v291
      %v302 = vpack.c.b16 %v297, %v292
      %v303 = vpack.c.b16 %v298, %v293
      %v304 = vpack.c.b16 %v299, %v294
      %v305 = vpack.c.b16 %v300, %v295
      %v382 = vunpack.c.l.b16 %v211
      %v383 = vunpack.c.l.b16 %v212
      %v384 = vunpack.c.l.b16 %v213
      %v385 = vunpack.c.l.b16 %v214
      %v386 = vunpack.c.l.b16 %v215
      %v387 = vunpack.c.l.b16 %v216
      %v388 = vunpack.c.l.b16 %v217
      %v389 = vunpack.c.l.b16 %v218
      %v390 = vunpack.c.l.b16 %v219
      %v391 = vunpack.c.l.b16 %v220
      %v392 = vunpack.c.l.b16 %v221
      %v393 = vunpack.c.l.b16 %v222
      %v394 = vunpack.c.l.b16 %v223
      %v395 = vunpack.c.l.b16 %v224
      %v396 = vunpack.c.l.b16 %v225
      %v397 = vunpack.c.l.b16 %v226
      %v398 = vunpack.c.l.b16 %v227
      %v399 = vunpack.c.l.b16 %v228
      %v400 = vunpack.c.l.b16 %v229
      %v401 = vunpack.c.l.b16 %v230
      %v402 = vunpack.c.l.b16 %v231
      %v403 = vunpack.c.l.b16 %v232
      %v404 = vunpack.c.l.b16 %v233
      %v405 = vunpack.c.l.b16 %v234
      %v406 = vunpack.c.l.b16 %v235
      %v407 = vunpack.c.l.b16 %v236
      %v408 = vunpack.c.l.b16 %v237
      %v409 = vunpack.c.l.b16 %v238
      %v410 = vunpack.c.l.b16 %v239
      %v411 = vunpack.c.l.b16 %v240
      %v412 = vunpack.c.l.b16 %v241
      %v413 = vunpack.c.l.b16 %v242
      %v414 = vunpack.c.l.b16 %v243
      %v415 = vunpack.c.l.b16 %v244
      %v416 = vunpack.c.l.b16 %v245
      %v417 = vunpack.c.l.b16 %v246
      %v418 = vunpack.c.l.b16 %v247
      %v419 = vunpack.c.l.b16 %v248
      %v420 = vunpack.c.l.b16 %v249
      %v421 = vunpack.c.l.b16 %v250
      %v422 = vunpack.c.l.b16 %v251
      %v423 = vunpack.c.l.b16 %v252
      %v424 = vunpack.c.l.b16 %v253
      %v425 = vunpack.c.l.b16 %v254
      %v426 = vunpack.c.l.b16 %v255
      %v427 = vunpack.c.l.b16 %v256
      %v428 = vunpack.c.l.b16 %v257
      %v429 = vunpack.c.l.b16 %v258
      %v430 = vunpack.c.l.b16 %v259
      %v431 = vunpack.c.l.b16 %v260
      %v432 = vunpack.c.l.b16 %v261
      %v433 = vunpack.c.l.b16 %v262
      %v434 = vunpack.c.l.b16 %v263
      %v435 = vunpack.c.l.b16 %v264
      %v436 = vunpack.c.l.b16 %v265
      %v437 = vunpack.c.l.b16 %v266
      %v438 = vunpack.c.l.b16 %v267
      %v439 = vunpack.c.l.b16 %v268
      %v440 = vunpack.c.l.b16 %v269
      %v441 = vunpack.c.l.b16 %v270
      %v442 = vunpack.c.l.b16 %v271
      %v443 = vunpack.c.l.b16 %v272
      %v444 = vunpack.c.l.b16 %v273
      %v445 = vunpack.c.l.b16 %v274
      %v446 = vunpack.c.l.b16 %v275
      %v447 = vunpack.c.l.b16 %v276
      %v448 = vunpack.c.l.b16 %v277
      %v449 = vunpack.c.l.b16 %v278
      %v450 = vunpack.c.l.b16 %v279
      %v451 = vunpack.c.l.b16 %v280
      %v452 = vunpack.c.l.b16 %v281
      %v453 = vunpack.c.l.b16 %v282
      %v454 = vpack.c.b16 %v383, %v382
      %v455 = vpack.c.b16 %v385, %v384
      %v456 = vpack.c.b16 %v387, %v386
      %v457 = vpack.c.b16 %v389, %v388
      %v458 = vpack.c.b16 %v391, %v390
      %v459 = vpack.c.b16 %v393, %v392
      %v460 = vpack.c.b16 %v395, %v394
      %v461 = vpack.c.b16 %v397, %v396
      %v462 = vpack.c.b16 %v399, %v398
      %v463 = vpack.c.b16 %v401, %v400
      %v464 = vpack.c.b16 %v403, %v402
      %v465 = vpack.c.b16 %v405, %v404
      %v466 = vpack.c.b16 %v407, %v406
      %v467 = vpack.c.b16 %v409, %v408
      %v468 = vpack.c.b16 %v411, %v410
      %v469 = vpack.c.b16 %v413, %v412
      %v470 = vpack.c.b16 %v415, %v414
      %v471 = vpack.c.b16 %v417, %v416
      %v472 = vpack.c.b16 %v419, %v418
      %v473 = vpack.c.b16 %v421, %v420
      %v474 = vpack.c.b16 %v423, %v422
      %v475 = vpack.c.b16 %v425, %v424
      %v476 = vpack.c.b16 %v427, %v426
      %v477 = vpack.c.b16 %v429, %v428
      %v478 = vpack.c.b16 %v431, %v430
      %v479 = vpack.c.b16 %v433, %v432
      %v480 = vpack.c.b16 %v435, %v434
      %v481 = vpack.c.b16 %v437, %v436
      %v482 = vpack.c.b16 %v439, %v438
      %v483 = vpack.c.b16 %v441, %v440
      %v484 = vpack.c.b16 %v443, %v442
      %v485 = vpack.c.b16 %v445, %v444
      %v486 = vpack.c.b16 %v447, %v446
      %v487 = vpack.c.b16 %v449, %v448
      %v488 = vpack.c.b16 %v451, %v450
      %v489 = vpack.c.b16 %v453, %v452
      %vm526 = vcmask 523264
      %v528 = vsel %vm526, %v305, 0
      %530 = vmatpush.bf16.msra.mxu0 %v461
      %531 = vmatpush.bf16.msra.mxu0 %v460
      %532 = vmatpush.bf16.msra.mxu0 %v459
      %533 = vmatpush.bf16.msra.mxu0 %v458
      %534 = vmatpush.bf16.msra.mxu0 %v457
      %535 = vmatpush.bf16.msra.mxu0 %v456
      %536 = vmatpush.bf16.msra.mxu0 %v455
      %537 = vmatpush.bf16.msra.mxu0 %v454
      %538 = vmatmul.bf16.gmra.mxu0 %v301
      %v539 = vpop.f32.mrf.mxu0
      %v540 = vadd.f32 %v284, %v539
      %v541 = vpop.f32.mrf.mxu0
      %v542 = vadd.f32 %v284, %v541
      %543 = vdwg.mxu0
      %544 = vmatpush.bf16.msra.mxu0 %v469
      %545 = vmatpush.bf16.msra.mxu0 %v468
      %546 = vmatpush.bf16.msra.mxu0 %v467
      %547 = vmatpush.bf16.msra.mxu0 %v466
      %548 = vmatpush.bf16.msra.mxu0 %v465
      %549 = vmatpush.bf16.msra.mxu0 %v464
      %550 = vmatpush.bf16.msra.mxu0 %v463
      %551 = vmatpush.bf16.msra.mxu0 %v462
      %552 = vmatmul.bf16.gmra.mxu0 %v302
      %v553 = vpop.f32.mrf.mxu0
      %v554 = vadd.f32 %v540, %v553
      %v555 = vpop.f32.mrf.mxu0
      %v556 = vadd.f32 %v542, %v555
      %557 = vdwg.mxu0
      %558 = vmatpush.bf16.msra.mxu0 %v477
      %559 = vmatpush.bf16.msra.mxu0 %v476
      %560 = vmatpush.bf16.msra.mxu0 %v475
      %561 = vmatpush.bf16.msra.mxu0 %v474
      %562 = vmatpush.bf16.msra.mxu0 %v473
      %563 = vmatpush.bf16.msra.mxu0 %v472
      %564 = vmatpush.bf16.msra.mxu0 %v471
      %565 = vmatpush.bf16.msra.mxu0 %v470
      %566 = vmatmul.bf16.gmra.mxu0 %v303
      %v567 = vpop.f32.mrf.mxu0
      %v568 = vadd.f32 %v554, %v567
      %v569 = vpop.f32.mrf.mxu0
      %v570 = vadd.f32 %v556, %v569
      %571 = vdwg.mxu0
      %572 = vmatpush.bf16.msra.mxu0 %v485
      %573 = vmatpush.bf16.msra.mxu0 %v484
      %574 = vmatpush.bf16.msra.mxu0 %v483
      %575 = vmatpush.bf16.msra.mxu0 %v482
      %576 = vmatpush.bf16.msra.mxu0 %v481
      %577 = vmatpush.bf16.msra.mxu0 %v480
      %578 = vmatpush.bf16.msra.mxu0 %v479
      %579 = vmatpush.bf16.msra.mxu0 %v478
      %580 = vmatmul.bf16.gmra.mxu0 %v304
      %v581 = vpop.f32.mrf.mxu0
      %v582 = vadd.f32 %v568, %v581
      %v583 = vpop.f32.mrf.mxu0
      %v584 = vadd.f32 %v570, %v583
      %585 = vdwg.mxu0
      %586 = vmatpush.bf16.msra.mxu0 0
      %587 = vmatpush.bf16.msra.mxu0 0
      %588 = vmatpush.bf16.msra.mxu0 0
      %589 = vmatpush.bf16.msra.mxu0 0
      %590 = vmatpush.bf16.msra.mxu0 %v489
      %591 = vmatpush.bf16.msra.mxu0 %v488
      %592 = vmatpush.bf16.msra.mxu0 %v487
      %593 = vmatpush.bf16.msra.mxu0 %v486
      %594 = vmatmul.bf16.gmra.mxu0 %v528
      %v595 = vpop.f32.mrf.mxu0
      %v596 = vadd.f32 %v582, %v595
      %v597 = vpop.f32.mrf.mxu0
      %v598 = vadd.f32 %v584, %v597
      %599 = vdwg.mxu0
      %v600 = vld [vmem:[%s2] sm:$0xff]
      %v601 = vld [vmem:[%s2 + $0x8] sm:$0xff]
      %v602 = vld [vmem:[%s2 + $0x10] sm:$0xff]
      %v603 = vld [vmem:[%s2 + $0x18] sm:$0xff]
      %v604 = vld [vmem:[%s2 + $0x20] sm:$0xff]
      %v605 = vld [vmem:[%s2 + $0x28] sm:$0xff]
      %v606 = vld [vmem:[%s2 + $0x30] sm:$0xff]
      %v607 = vld [vmem:[%s2 + $0x38] sm:$0xff]
      %v608 = vld [vmem:[%s2 + $0x40] sm:$0xff]
      %v609 = vld [vmem:[%s2 + $0x48] sm:$0xff]
      %v610 = vld [vmem:[%s2 + $0x50] sm:$0xff]
      %v611 = vld [vmem:[%s2 + $0x58] sm:$0xff]
      %v612 = vld [vmem:[%s2 + $0x60] sm:$0xff]
      %v613 = vld [vmem:[%s2 + $0x68] sm:$0xff]
      %v614 = vld [vmem:[%s2 + $0x70] sm:$0xff]
      %v615 = vld [vmem:[%s2 + $0x78] sm:$0xff]
      %616 = vmatpush.msra.mxu0 %v615
      %617 = vmatpush.msra.mxu0 %v614
      %618 = vmatpush.msra.mxu0 %v613
      %619 = vmatpush.msra.mxu0 %v612
      %620 = vmatpush.msra.mxu0 %v611
      %621 = vmatpush.msra.mxu0 %v610
      %622 = vmatpush.msra.mxu0 %v609
      %623 = vmatpush.msra.mxu0 %v608
      %624 = vmatpush.msra.mxu0 %v607
      %625 = vmatpush.msra.mxu0 %v606
      %626 = vmatpush.msra.mxu0 %v605
      %627 = vmatpush.msra.mxu0 %v604
      %628 = vmatpush.msra.mxu0 %v603
      %629 = vmatpush.msra.mxu0 %v602
      %630 = vmatpush.msra.mxu0 %v601
      %631 = vmatpush.msra.mxu0 %v600
      %632 = vmatmul.f32.gmra.mxu0 %v596
      %v633 = vpop.f32.mrf.mxu0
      %v634 = vadd.f32 0.0, %v633
      %635 = vmatmul.f32.gmra.mxu0 %v598
      %v636 = vpop.f32.mrf.mxu0
      %v637 = vadd.f32 0.0, %v636
      %638 = vdwg.mxu0
      %v639 = vmul.f32 %v596, %v596
      %v640 = vmul.f32 %v598, %v598
      %641 = vmatpush.msra.mxu0 %v615
      %642 = vmatpush.msra.mxu0 %v614
      %643 = vmatpush.msra.mxu0 %v613
      %644 = vmatpush.msra.mxu0 %v612
      %645 = vmatpush.msra.mxu0 %v611
      %646 = vmatpush.msra.mxu0 %v610
      %647 = vmatpush.msra.mxu0 %v609
      %648 = vmatpush.msra.mxu0 %v608
      %649 = vmatpush.msra.mxu0 %v607
      %650 = vmatpush.msra.mxu0 %v606
      %651 = vmatpush.msra.mxu0 %v605
      %652 = vmatpush.msra.mxu0 %v604
      %653 = vmatpush.msra.mxu0 %v603
      %654 = vmatpush.msra.mxu0 %v602
      %655 = vmatpush.msra.mxu0 %v601
      %656 = vmatpush.msra.mxu0 %v600
      %657 = vmatmul.f32.gmra.mxu0 %v639
      %v658 = vpop.f32.mrf.mxu0
      %v659 = vadd.f32 0.0, %v658
      %660 = vmatmul.f32.gmra.mxu0 %v640
      %v661 = vpop.f32.mrf.mxu0
      %v662 = vadd.f32 0.0, %v661
      %663 = vdwg.mxu0
      %v664 = vmul.f32 %v634, 0.125
      %v665 = vmul.f32 %v637, 0.125
      %v666 = vmul.f32 %v659, 0.125
      %v667 = vmul.f32 %v662, 0.125
      %v668 = vmul.f32 %v664, %v664
      %v669 = vmul.f32 %v665, %v665
      %v670 = vsub.f32 %v666, %v668
      %v671 = vsub.f32 %v667, %v669
      %v672 = vmax.f32 %v670, 0.0
      %v673 = vmax.f32 %v671, 0.0
      %v674 = vsub.f32 %v596, %v664
      %v675 = vsub.f32 %v598, %v665
      %v676 = vadd.f32 %v672, 1e-05
      %v677 = vadd.f32 %v673, 1e-05
      %v678 = vrsqrt.pop %v676
      %v679 = vmul.f32 %v678, %v676
      %v680 = vmul.f32 %v679, %v678
      %v681 = vmul.f32 0.5, %v680
      %v682 = vsub.f32 1.5, %v681
      %v683 = vmul.f32 %v678, %v682
      %vm684 = vweird.f32 %v676
      %vm685 = vweird.f32 %v678
      %vm686 = vmor %vm684, %vm685
      %v687 = vsel %vm686, %v678, %v683
      %v688 = vrsqrt.pop %v677
      %v689 = vmul.f32 %v688, %v677
      %v690 = vmul.f32 %v689, %v688
      %v691 = vmul.f32 0.5, %v690
      %v692 = vsub.f32 1.5, %v691
      %v693 = vmul.f32 %v688, %v692
      %vm694 = vweird.f32 %v677
      %vm695 = vweird.f32 %v688
      %vm696 = vmor %vm694, %vm695
      %v697 = vsel %vm696, %v688, %v693
      %v698 = vmul.f32 %v674, %v687
      %v699 = vmul.f32 %v675, %v697
      %v700 = vperm.slane %v283, 1
      %v701 = vmul.f32 %v698, %v700
      %v702 = vmul.f32 %v699, %v700
      %v703 = vperm.slane %v283, 2
      %v704 = vadd.f32 %v701, %v703
      %v705 = vadd.f32 %v702, %v703
      %v706 = vmax.f32 %v704, 0.0
      %v707 = vmax.f32 %v705, 0.0
      %708 = vst [vmem:[%s202] sm:$0xff] %v706
      %709 = vst [vmem:[%s202 + $0x8] sm:$0xff] %v707
      %s710 = smul.u32 2, %s15
      %p711 = scmp.lt.s32.totalorder %s710, 3
      %s712 = scalar_select %p711, %s710, 3
      %s713 = smul.addr %s712, 8
      %s714 = scalar_lea.vmem %s4, %s713
      // Predicated region
      $region37: #{conv2d_block_forward.1} parent=35 // pred_check
        %p715 = pneg %p122
      $region38: #{conv2d_block_forward.1} parent=35 // pred_check_branch
        %717 = sbr.rel (%p715) target = $region40
      $region39: #{conv2d_block_forward.1} parent=35 // pred_region
        %s718 = smul.u32 2, %s15
      $region40: #{conv2d_block_forward.1} parent=35 // pred_fallthru
        _
    $region36: #{conv2d_block_forward.1} parent=5 // pred_fallthru
      _
    %p719 = scmp.le.s32.totalorder 2, %s10
    // Predicated region
    $region41: #{conv2d_block_forward.1} parent=5 // pred_check
      %p720 = pneg %p719
    $region42: #{conv2d_block_forward.1} parent=5 // pred_check_branch
      %722 = sbr.rel (%p720) target = $region44
    $region43: #{conv2d_block_forward.1} parent=5 // pred_region
      %s723 = ssub.s32 %s10, 2
      // Predicated region
      $region45: #{conv2d_block_forward.1} parent=43 // pred_check
        %p724 = pneg %p128
      $region46: #{conv2d_block_forward.1} parent=43 // pred_check_branch
        %726 = sbr.rel (%p724) target = $region48
      $region47: #{conv2d_block_forward.1} parent=43 // pred_region
        %s727 = smul.u32 2, %s16
        %p728 = scmp.lt.s32.totalorder %s727, 3
        %s729 = scalar_select %p728, %s727, 3
        %s730 = smul.addr %s729, 8
        %s731 = scalar_lea.vmem %s4, %s730
      $region48: #{conv2d_block_forward.1} parent=43 // pred_fallthru
        _
    $region44: #{conv2d_block_forward.1} parent=5 // pred_fallthru
      _
  $region6: #{conv2d_block_forward.1} parent=0 // loop_footer
    %s14 = sadd.s32 1, %s10
  $region7: #{conv2d_block_forward.1} parent=0 // loop_footer_branch
    %9 = sbr.rel target = $region3
  $region8: #{conv2d_block_forward.1} parent=0 // loop_exit
    _

</llo_original>
